<compile_context>
chip_gen: v5e
topology: v5e:2x2
jax: 0.10.0
libtpu: 0.0.40
codegen_flags: <defaults>
</compile_context>

<pallas_src>
import functools

import jax
import jax.numpy as jnp
from jax.experimental import pallas as pl
from jax.experimental.pallas import tpu as pltpu


# ------------------------------ Pallas kernel ------------------------------

def _head_fused_kernel(x_ref, w_ref, bias_ref, o_ref):
    """LayerNorm statistics (f32, eps=1e-5, biased var, as in PyTorch; the
    gamma/beta affine is pre-folded into w/bias) -> matmul with the folded
    (LN-affine o expansion o pixel-shuffle o final-linear) weight (bf16
    operands, f32 accumulate on the MXU) -> +bias -> sigmoid -> bf16 store."""
    x = x_ref[...].astype(jnp.float32)                         # (tm, C)
    mean = jnp.mean(x, axis=-1, keepdims=True)
    var = jnp.mean(jnp.square(x - mean), axis=-1, keepdims=True)
    xn = (x - mean) * jax.lax.rsqrt(var + 1e-5)                # gamma/beta folded away
    y = jnp.dot(xn.astype(jnp.bfloat16), w_ref[...],           # w is bf16 (C, p*p*out)
                preferred_element_type=jnp.float32)            # (tm, p*p*out) f32
    y = y + bias_ref[...]
    o_ref[...] = jax.nn.sigmoid(y).astype(o_ref.dtype)         # bf16 out


def _pick_tile_rows(n_rows, c_in, c_out, x_bytes, out_bytes, *,
                    max_rows=2048, min_grid=2,
                    budget_bytes=32 * 1024 * 1024):
    """Largest row tile whose double-buffered input+output blocks plus the
    grid-invariant weight/bias fit a conservative VMEM budget, capped so the
    grid has at least `min_grid` steps (lets "parallel" rows shard across
    v7x's two TensorCores; harmless on single-TC v5e/v6e)."""
    fixed = 2 * (c_in * c_out * 2) + 2 * (c_out * 4)     # bf16 weight + f32 bias (x2 pipeline bufs)
    per_row = 2 * c_in * x_bytes + 2 * c_out * out_bytes  # double-buffered in + out blocks
    tm = max(16, (budget_bytes - fixed) // per_row)
    tm = min(int(max_rows), int(tm))
    split = (n_rows + min_grid - 1) // min_grid          # ceil(n / min_grid)
    split = ((split + 15) // 16) * 16                    # bf16-friendly sublane multiple
    tm = min(tm, split)
    tm = max(16, (tm // 16) * 16)
    if tm >= n_rows:
        return int(n_rows)                               # one full-extent block (always legal)
    return int(tm)


def _vmem_limit_bytes(tm, c_in, c_out, x_bytes, out_bytes):
    """Actual footprint (pipeline-doubled blocks + invariants) x2 headroom for
    compiler-internal scratch; floors at 8 MiB, stays far below v7x's 64 MiB/TC
    even at tm=2048 (~1.6 MiB of blocks)."""
    fixed = 2 * (c_in * c_out * 2) + 2 * (c_out * 4)
    blocks = 2 * tm * c_in * x_bytes + 2 * tm * c_out * out_bytes
    return int(min(32 * 1024 * 1024, max(8 * 1024 * 1024, 2 * (fixed + blocks))))


def fused_head_matmul(x2d, w_fold, b_fold, *, max_rows=2048):
    """x2d: (N, C) tokens; w_fold: (C, p*p*out) bf16 (LN gamma folded in);
    b_fold: (p*p*out,) f32 (LN beta folded in).
    Returns sigmoid(normalize(x) @ w_fold + b_fold) in bf16, shape (N, p*p*out)."""
    n, c_in = x2d.shape
    c_out = w_fold.shape[1]
    x_bytes = jnp.dtype(x2d.dtype).itemsize
    out_bytes = jnp.dtype(jnp.bfloat16).itemsize
    tm = _pick_tile_rows(n, c_in, c_out, x_bytes, out_bytes, max_rows=max_rows)
    return pl.pallas_call(
        _head_fused_kernel,
        out_shape=jax.ShapeDtypeStruct((n, c_out), jnp.bfloat16),
        grid=(pl.cdiv(n, tm),),
        in_specs=[
            pl.BlockSpec((tm, c_in), lambda i: (i, 0)),     # tokens
            pl.BlockSpec((c_in, c_out), lambda i: (0, 0)),  # folded weight (bf16, grid-invariant)
            pl.BlockSpec((1, c_out), lambda i: (0, 0)),     # folded bias (f32, grid-invariant)
        ],
        out_specs=pl.BlockSpec((tm, c_out), lambda i: (i, 0)),
        compiler_params=pltpu.CompilerParams(
            dimension_semantics=("parallel",),
            vmem_limit_bytes=_vmem_limit_bytes(tm, c_in, c_out, x_bytes, out_bytes),
        ),
    )(x2d, w_fold, b_fold.reshape(1, c_out))


# --------------------------- Head forward (glue) ---------------------------

def _fold_weights(expand_w, final_w, final_b, gamma, beta, *, C, p):
    """Compose LN affine, expansion Linear, the view/rearrange permutation and
    the final Linear into one (C, p*p*out) bf16 matrix + (p*p*out,) f32 bias.

    For a token at grid position (h, w), expansion output index
      k = (a*p + b2)*C + p2*(p*cs) + p1*cs + cm            (cs = C // p^2)
    ends up at image position y = h*p + (w*p+a)//W, x = p1*W + (w*p+a)%W,
    channel ch = (b2*p + p2)*cs + cm.  So pixel j = a*p + p1 of a token takes
    channel ch from expansion row perm[j, ch] below.

    With xn the zero-mean/unit-var normalized tokens,
      (xn*gamma + beta) @ W + b  ==  xn @ (gamma[:,None]*W) + (beta @ W + b),
    so gamma/beta fold exactly into the weight/bias."""
    hi = jax.lax.Precision.HIGHEST
    cs = C // (p * p)
    out_chans = final_w.shape[0]
    perm = jnp.arange(p * p * C, dtype=jnp.int32).reshape(p, p, p, p, cs)  # (a,b2,p2,p1,cm)
    perm = jnp.transpose(perm, (0, 3, 1, 2, 4)).reshape(p * p, C)          # (j, ch) -> k
    E = expand_w[perm]                                            # (p*p, C_ch, C_in)
    w_f32 = jnp.einsum("oh,jhc->cjo", final_w, E,
                       precision=hi).reshape(C, p * p * out_chans)
    b_fold = (jnp.tile(final_b.astype(jnp.float32), p * p)
              + jnp.matmul(beta.astype(jnp.float32), w_f32, precision=hi))
    w_fold = (gamma.astype(jnp.float32)[:, None] * w_f32).astype(jnp.bfloat16)
    return w_fold, b_fold.astype(jnp.float32)


def head_forward(x, params, *, H, W, patch_size, img_size):
    """Reproduces Head.forward (PatchExpanding -> crop -> Linear+Sigmoid).

    x: (B, H*W, C), C = decode_dim.  Returns (B, H1*W1, out_chans) in bf16.
    """
    B, L, C = x.shape
    assert L == H * W, "input feature has wrong size"
    p = patch_size
    assert C % (p * p) == 0
    out_chans = params["final_w"].shape[0]

    # Fold LN affine + the two linears + fixed permutation (tiny one-off einsum).
    w_fold, b_fold = _fold_weights(params["expand_w"], params["final_w"],
                                   params["final_b"], params["norm_gamma"],
                                   params["norm_beta"], C=C, p=p)

    # Single fused Pallas pass over the pre-expansion tokens (bf16 output).
    z = fused_head_matmul(x.reshape(B * L, C), w_fold, b_fold)   # (B*L, p*p*out)

    # Pixel shuffle + crop on the small bf16 per-pixel output: one XLA transpose
    # with the slice fused in (reshapes are bitcasts, no big intermediates).
    Hp, Wp = H * p, W * p
    H1, W1 = img_size
    img = z.reshape(B, H, p, W, p, out_chans)             # (b, h, s, t, p1, o)
    img = jnp.transpose(img, (0, 1, 2, 4, 3, 5))          # (b, h, s, p1, t, o)
    img = img.reshape(B, Hp, Wp, out_chans)               # y = h*p+s, x = p1*W+t
    if (H1, W1) != (Hp, Wp):
        img = img[:, :H1, :W1, :]
    return img.reshape(B, H1 * W1, out_chans)


# --------------------- straightforward reference (check) --------------------

def head_reference(x, params, *, H, W, patch_size, img_size):
    """Plain-JAX mirror of the PyTorch Head.forward, used to verify the folded
    Pallas path numerically."""
    B, L, C = x.shape
    p = patch_size
    hi = jax.lax.Precision.HIGHEST
    mean = jnp.mean(x, axis=-1, keepdims=True)
    var = jnp.mean(jnp.square(x - mean), axis=-1, keepdims=True)
    xn = (x - mean) / jnp.sqrt(var + 1e-5)
    xn = xn * params["norm_gamma"] + params["norm_beta"]
    e = jnp.matmul(xn, params["expand_w"].T, precision=hi)      # (B, L, p*p*C)
    e = e.reshape(B, H * p, W * p, C)
    cs = C // (p * p)
    e = e.reshape(B, H * p, W * p, p, p, cs)                    # .., (p2, p1, c)
    e = jnp.transpose(e, (0, 1, 4, 2, 3, 5))                    # b (h p1) (w p2) c
    e = e.reshape(B, H * p * p, W * p * p, cs).reshape(B, -1, C)
    Hp, Wp = H * p, W * p
    H1, W1 = img_size
    if H1 != Hp or W1 != Wp:
        e = e.reshape(B, Hp, Wp, C)[:, :H1, :W1, :].reshape(B, H1 * W1, C)
    y = jnp.matmul(e, params["final_w"].T, precision=hi) + params["final_b"]
    return jax.nn.sigmoid(y)


# ----------------------------------- demo -----------------------------------

if __name__ == "__main__":
    key = jax.random.PRNGKey(0)

    B = 2
    decode_dim = 32          # C (must be divisible by patch_size**2)
    patch_size = 4
    out_chans = 8
    H = W = 8                # token grid -> L = 64
    img_size = (30, 30)      # H*p = 32 > 30 -> exercises the crop branch

    ks = jax.random.split(key, 6)
    x = jax.random.normal(ks[0], (B, H * W, decode_dim), dtype=jnp.float32)

    params = {
        # LayerNorm(decode_dim)
        "norm_gamma": 1.0 + 0.1 * jax.random.normal(ks[1], (decode_dim,), jnp.float32),
        "norm_beta": 0.1 * jax.random.normal(ks[2], (decode_dim,), jnp.float32),
        # expansion: Linear(decode_dim, patch_size**2 * decode_dim, bias=False)
        "expand_w": 0.2 * jax.random.normal(
            ks[3], (patch_size * patch_size * decode_dim, decode_dim), jnp.float32),
        # final: Linear(decode_dim, out_chans) + Sigmoid
        "final_w": 0.2 * jax.random.normal(ks[4], (out_chans, decode_dim), jnp.float32),
        "final_b": 0.1 * jax.random.normal(ks[5], (out_chans,), jnp.float32),
    }

    fwd = jax.jit(functools.partial(head_forward, H=H, W=W,
                                    patch_size=patch_size, img_size=img_size))
    out = jax.block_until_ready(fwd(x, params))

    ref = jax.block_until_ready(
        head_reference(x, params, H=H, W=W, patch_size=patch_size, img_size=img_size))

    assert out.shape == (B, img_size[0] * img_size[1], out_chans), out.shape
    assert out.dtype == jnp.bfloat16, out.dtype
    out_f32 = out.astype(jnp.float32)
    assert bool(jnp.all(jnp.isfinite(out_f32)))
    assert bool(jnp.all((out_f32 >= 0.0) & (out_f32 <= 1.0)))   # sigmoid range
    err = jnp.abs(out_f32 - ref)
    # bf16 weights/activations/output in the kernel -> small numeric drift; a
    # wrong permutation in the weight fold would blow far past these thresholds.
    assert float(err.max()) < 4e-2, float(err.max())
    assert float(err.mean()) < 1.2e-2, float(err.mean())
    print("KERNEL_OK")
</pallas_src>

<mosaic_0001>
module attributes {stable_mosaic.version = 11 : i64} {
  func.func @_head_fused_kernel(%arg0: i32, %arg1: memref<64x32xf32, #tpu.memory_space<vmem>>, %arg2: memref<32x128xbf16, #tpu.memory_space<vmem>>, %arg3: memref<1x128xf32, #tpu.memory_space<vmem>>, %arg4: memref<64x128xbf16, #tpu.memory_space<vmem>>) attributes {dimension_semantics = [#tpu.dimension_semantics<parallel>], iteration_bounds = array<i64: 2>, scalar_prefetch = 0 : i64, scratch_operands = 0 : i64, tpu.core_type = #tpu.core_type<tc>, window_params = [{transform_indices = @transform_0, window_bounds = array<i64: 64, 32>}, {pipeline_mode = #tpu.pipeline_mode<synchronous>, transform_indices = @transform_1, window_bounds = array<i64: 32, 128>}, {pipeline_mode = #tpu.pipeline_mode<synchronous>, transform_indices = @transform_2, window_bounds = array<i64: 1, 128>}, {transform_indices = @transform_3, window_bounds = array<i64: 64, 128>}]} {
    %c0 = arith.constant 0 : index
    %c0_0 = arith.constant 0 : index
    %0 = vector.load %arg1[%c0, %c0_0] : memref<64x32xf32, #tpu.memory_space<vmem>>, vector<64x32xf32>
    %cst = arith.constant dense<0.000000e+00> : vector<64xf32>
    %1 = vector.multi_reduction <add>, %0, %cst [1] : vector<64x32xf32> to vector<64xf32>
    %2 = vector.shape_cast %1 : vector<64xf32> to vector<64x1xf32>
    %cst_1 = arith.constant 3.200000e+01 : f32
    %3 = vector.broadcast %cst_1 : f32 to vector<64x1xf32>
    %4 = arith.divf %2, %3 : vector<64x1xf32>
    %5 = vector.broadcast %4 : vector<64x1xf32> to vector<64x32xf32>
    %6 = arith.subf %0, %5 : vector<64x32xf32>
    %7 = arith.mulf %6, %6 : vector<64x32xf32>
    %cst_2 = arith.constant dense<0.000000e+00> : vector<64xf32>
    %8 = vector.multi_reduction <add>, %7, %cst_2 [1] : vector<64x32xf32> to vector<64xf32>
    %9 = vector.shape_cast %8 : vector<64xf32> to vector<64x1xf32>
    %cst_3 = arith.constant 3.200000e+01 : f32
    %10 = vector.broadcast %cst_3 : f32 to vector<64x1xf32>
    %11 = arith.divf %9, %10 : vector<64x1xf32>
    %12 = vector.broadcast %4 : vector<64x1xf32> to vector<64x32xf32>
    %13 = arith.subf %0, %12 : vector<64x32xf32>
    %cst_4 = arith.constant 9.99999974E-6 : f32
    %14 = vector.broadcast %cst_4 : f32 to vector<64x1xf32>
    %15 = arith.addf %11, %14 : vector<64x1xf32>
    %16 = math.rsqrt %15 : vector<64x1xf32>
    %17 = vector.broadcast %16 : vector<64x1xf32> to vector<64x32xf32>
    %18 = arith.mulf %13, %17 : vector<64x32xf32>
    %19 = arith.truncf %18 : vector<64x32xf32> to vector<64x32xbf16>
    %c0_5 = arith.constant 0 : index
    %c0_6 = arith.constant 0 : index
    %20 = vector.load %arg2[%c0_5, %c0_6] : memref<32x128xbf16, #tpu.memory_space<vmem>>, vector<32x128xbf16>
    %cst_7 = arith.constant dense<0.000000e+00> : vector<64x128xf32>
    %21 = tpu.matmul %19, %20, %cst_7 {dimension_numbers = #tpu.dot_dimension_numbers<[1], [0], [0], [1], [0, 0, 1, 1], [], []>} : vector<64x32xbf16>, vector<32x128xbf16>, vector<64x128xf32> -> vector<64x128xf32>
    %c0_8 = arith.constant 0 : index
    %c0_9 = arith.constant 0 : index
    %22 = vector.load %arg3[%c0_8, %c0_9] : memref<1x128xf32, #tpu.memory_space<vmem>>, vector<1x128xf32>
    %23 = vector.broadcast %22 : vector<1x128xf32> to vector<64x128xf32>
    %24 = arith.addf %21, %23 : vector<64x128xf32>
    %25 = arith.negf %24 : vector<64x128xf32>
    %26 = math.exp %25 : vector<64x128xf32>
    %cst_10 = arith.constant 1.000000e+00 : f32
    %27 = vector.broadcast %cst_10 : f32 to vector<64x128xf32>
    %28 = arith.addf %27, %26 : vector<64x128xf32>
    %29 = arith.divf %27, %28 : vector<64x128xf32>
    %30 = arith.truncf %29 : vector<64x128xf32> to vector<64x128xbf16>
    %c0_11 = arith.constant 0 : index
    %c0_12 = arith.constant 0 : index
    %31 = vector.load %arg4[%c0_11, %c0_12] : memref<64x128xbf16, #tpu.memory_space<vmem>>, vector<64x128xbf16>
    tpu.vector_store %arg4[%c0_11, %c0_12], %30 {strides = array<i32>} : memref<64x128xbf16, #tpu.memory_space<vmem>>, vector<64x128xbf16>,
    return
  }
  func.func @transform_0(%arg0: i32) -> (i32, i32) {
    %c0_i32 = arith.constant 0 : i32
    %c0_i32_0 = arith.constant 0 : i32
    return %arg0, %c0_i32 : i32, i32
  }
  func.func @transform_1(%arg0: i32) -> (i32, i32) {
    %c0_i32 = arith.constant 0 : i32
    %c0_i32_0 = arith.constant 0 : i32
    %c0_i32_1 = arith.constant 0 : i32
    return %c0_i32, %c0_i32_0 : i32, i32
  }
  func.func @transform_2(%arg0: i32) -> (i32, i32) {
    %c0_i32 = arith.constant 0 : i32
    %c0_i32_0 = arith.constant 0 : i32
    %c0_i32_1 = arith.constant 0 : i32
    return %c0_i32, %c0_i32_0 : i32, i32
  }
  func.func @transform_3(%arg0: i32) -> (i32, i32) {
    %c0_i32 = arith.constant 0 : i32
    %c0_i32_0 = arith.constant 0 : i32
    return %arg0, %c0_i32 : i32, i32
  }
}

</mosaic_0001>

<llo_original>
// kernel: tile.8
$region0: #{tile.8}
  #allocation0 [shape = 's32[1]{0}', space=sflag, size = 0x4, scoped, tag = 'scoped memory for tile.8']
  %s0 = inlined_call_operand.vmem [shape: f32[8], index: 0, kind: input, shape index: {}]
  %s1 = inlined_call_operand.vmem [shape: f32[16,8], index: 1, kind: output, shape index: {}]
  // Predicated region
  $region2: #{tile.8} parent=0 // pred_check
    _
  $region3: #{tile.8} parent=0 // pred_check_branch
    %3 = sbr.rel (0) target = $region5
  $region4: #{tile.8} parent=0 // pred_region
    _
  $region5: #{tile.8} parent=0 // pred_fallthru
    _
  %v4 = vld [vmem:[%s0] ss:$0 sm:$0xff]
  %5 = vst [vmem:[%s1] sm:$0xff] %v4
  %s6 = scalar_lea.vmem %s1, 8
  %7 = vst [vmem:[%s6] sm:$0xff] %v4

// kernel: head_forward.1
$region0: #{head_forward.1}
  #allocation0 [shape = 'u32[]', space=smem, size = 0x4, offset = 0x4, fixed_abs, tag = 'smem constant byte address 0x4 - core index']
  #allocation1 [shape = 'u32[72,128]{1,0:T(1,128)}', space=vmem, size = 0x9000, scoped, tag = 'internal scratch']
  %s0 = inlined_call_operand.vmem [shape: f32[128,32], index: 0, kind: input, shape index: {}]
  %s1 = inlined_call_operand.vmem [shape: bf16[32,128], index: 1, kind: input, shape index: {}]
  %s2 = inlined_call_operand.vmem [shape: f32[1,128], index: 2, kind: input, shape index: {}]
  %s3 = inlined_call_operand.vmem [shape: bf16[128,128], index: 3, kind: output, shape index: {}]
  %s4 = sld [smem:[#allocation0]]
  $region45: #{head_forward.1} parent=0
    _
  %s6 = ssub.s32 1, %s4
  %s7 = scalar_select 0, %s6, %s4
  loop: start=0, step=1, limit=4
  $region2: #{head_forward.1} parent=0 // loop_pre_header
    _
  $region3: #{head_forward.1} parent=0 // loop_header
    %s9 = sphi 0, %s13
    %p10 = scmp.ge.s32.totalorder %s9, 4
    %s19 = sphi 0, %s21
    %s22 = sphi 0, %s19
    %s23 = sphi 0, %s22
    %s39 = sphi 0, %s23
    %s43 = sphi 0, %s43
    %s45 = sphi 0, %s43
    %s46 = sphi 0, %s45
    %s60 = sphi 0, %s46
    %s64 = sphi 0, %s64
    %s66 = sphi 0, %s64
    %s67 = sphi 0, %s66
    %s81 = sphi 0, %s67
    %s87 = sphi 0, %s89
    %s90 = sphi 0, %s87
    %s91 = sphi 0, %s90
    %s107 = sphi 0, %s91
  $region4: #{head_forward.1} parent=0 // loop_header_branch
    %12 = sbr.rel (%p10) target = $region8
  $region5: #{head_forward.1} parent=0 // loop_body
    %s14 = ssub.s32 %s9, 1
    %s15 = ssub.s32 %s9, 2
    %s16 = sadd.s32 %s9, 1
    %s17 = ssub.s32 %s9, %s16
    %p18 = scmp.eq.s32.totalorder %s17, 0
    %s20 = sadd.s32 %s19, 1
    %s21 = scalar_select %p18, %s19, %s20
    %p24 = pneg %p18
    %p25 = scmp.eq.s32.totalorder %s9, 1
    %p26 = por %p24, %p25
    %p27 = scmp.ne.s32.totalorder %s19, %s22
    %p28 = scmp.eq.s32.totalorder %s9, 0
    %p29 = por %p27, %p28
    %p30 = scmp.ne.s32.totalorder %s19, %s22
    %p31 = scmp.eq.s32.totalorder %s14, 1
    %p32 = por %p30, %p31
    %p33 = scmp.ne.s32.totalorder %s22, %s23
    %p34 = scmp.eq.s32.totalorder %s14, 0
    %p35 = por %p33, %p34
    %p36 = scmp.ne.s32.totalorder %s22, %s23
    %p37 = scmp.eq.s32.totalorder %s15, 1
    %p38 = por %p36, %p37
    %p40 = scmp.ne.s32.totalorder %s23, %s39
    %p41 = scmp.eq.s32.totalorder %s15, 0
    %p42 = por %p40, %p41
    %s44 = sadd.s32 %s43, 1
    %p47 = scmp.eq.s32.totalorder %s9, 1
    %p48 = scmp.ne.s32.totalorder %s43, %s45
    %p49 = scmp.eq.s32.totalorder %s9, 0
    %p50 = por %p48, %p49
    %p51 = scmp.ne.s32.totalorder %s43, %s45
    %p52 = scmp.eq.s32.totalorder %s14, 1
    %p53 = por %p51, %p52
    %p54 = scmp.ne.s32.totalorder %s45, %s46
    %p55 = scmp.eq.s32.totalorder %s14, 0
    %p56 = por %p54, %p55
    %p57 = scmp.ne.s32.totalorder %s45, %s46
    %p58 = scmp.eq.s32.totalorder %s15, 1
    %p59 = por %p57, %p58
    %p61 = scmp.ne.s32.totalorder %s46, %s60
    %p62 = scmp.eq.s32.totalorder %s15, 0
    %p63 = por %p61, %p62
    %s65 = sadd.s32 %s64, 1
    %p68 = scmp.eq.s32.totalorder %s9, 1
    %p69 = scmp.ne.s32.totalorder %s64, %s66
    %p70 = scmp.eq.s32.totalorder %s9, 0
    %p71 = por %p69, %p70
    %p72 = scmp.ne.s32.totalorder %s64, %s66
    %p73 = scmp.eq.s32.totalorder %s14, 1
    %p74 = por %p72, %p73
    %p75 = scmp.ne.s32.totalorder %s66, %s67
    %p76 = scmp.eq.s32.totalorder %s14, 0
    %p77 = por %p75, %p76
    %p78 = scmp.ne.s32.totalorder %s66, %s67
    %p79 = scmp.eq.s32.totalorder %s15, 1
    %p80 = por %p78, %p79
    %p82 = scmp.ne.s32.totalorder %s67, %s81
    %p83 = scmp.eq.s32.totalorder %s15, 0
    %p84 = por %p82, %p83
    %s85 = ssub.s32 %s9, %s16
    %p86 = scmp.eq.s32.totalorder %s85, 0
    %s88 = sadd.s32 %s87, 1
    %s89 = scalar_select %p86, %s87, %s88
    %p92 = pneg %p86
    %p93 = scmp.eq.s32.totalorder %s9, 1
    %p94 = por %p92, %p93
    %p95 = scmp.ne.s32.totalorder %s87, %s90
    %p96 = scmp.eq.s32.totalorder %s9, 0
    %p97 = por %p95, %p96
    %p98 = scmp.ne.s32.totalorder %s87, %s90
    %p99 = scmp.eq.s32.totalorder %s14, 1
    %p100 = por %p98, %p99
    %p101 = scmp.ne.s32.totalorder %s90, %s91
    %p102 = scmp.eq.s32.totalorder %s14, 0
    %p103 = por %p101, %p102
    %p104 = scmp.ne.s32.totalorder %s90, %s91
    %p105 = scmp.eq.s32.totalorder %s15, 1
    %p106 = por %p104, %p105
    %p108 = scmp.ne.s32.totalorder %s91, %s107
    %p109 = scmp.eq.s32.totalorder %s15, 0
    %p110 = por %p108, %p109
    %p111 = scmp.le.s32.totalorder 1, %s9
    %p112 = scmp.lt.s32.totalorder %s9, 3
    %p113 = pnand %p111, %p112
    %p114 = pneg %p113
    // Predicated region
    $region9: #{head_forward.1} parent=5 // pred_check
      _
    $region10: #{head_forward.1} parent=5 // pred_check_branch
      %116 = sbr.rel (%p113) target = $region12
    $region11: #{head_forward.1} parent=5 // pred_region
      %s117 = ssub.s32 %s9, 1
      // Predicated region
      $region13: #{head_forward.1} parent=11 // pred_check
        %p118 = pneg %p56
      $region14: #{head_forward.1} parent=11 // pred_check_branch
        %120 = sbr.rel (%p118) target = $region16
      $region15: #{head_forward.1} parent=11 // pred_region
        _
      $region16: #{head_forward.1} parent=11 // pred_fallthru
        _
      // Predicated region
      $region17: #{head_forward.1} parent=11 // pred_check
        %p121 = pneg %p77
      $region18: #{head_forward.1} parent=11 // pred_check_branch
        %123 = sbr.rel (%p121) target = $region20
      $region19: #{head_forward.1} parent=11 // pred_region
        _
      $region20: #{head_forward.1} parent=11 // pred_fallthru
        _
    $region12: #{head_forward.1} parent=5 // pred_fallthru
      _
    %p124 = scmp.lt.s32.totalorder %s9, 2
    // Predicated region
    $region21: #{head_forward.1} parent=5 // pred_check
      %p125 = pneg %p124
    $region22: #{head_forward.1} parent=5 // pred_check_branch
      %127 = sbr.rel (%p125) target = $region24
    $region23: #{head_forward.1} parent=5 // pred_region
      // Predicated region
      $region25: #{head_forward.1} parent=23 // pred_check
        %p128 = pneg %p29
      $region26: #{head_forward.1} parent=23 // pred_check_branch
        %130 = sbr.rel (%p128) target = $region28
      $region27: #{head_forward.1} parent=23 // pred_region
        %s131 = smul.u32 8, %s9
        %p132 = scmp.lt.s32.totalorder %s131, 15
        %s133 = scalar_select %p132, %s131, 15
        %s134 = smul.addr %s133, 8
        %s135 = scalar_lea.vmem %s0, %s134
        %s136 = smul.u32 8, %s9
      $region28: #{head_forward.1} parent=23 // pred_fallthru
        _
    $region24: #{head_forward.1} parent=5 // pred_fallthru
      _
    %p137 = scmp.le.s32.totalorder 1, %s9
    %p138 = scmp.lt.s32.totalorder %s9, 3
    %p139 = pnand %p137, %p138
    %p140 = pneg %p139
    // Predicated region
    $region29: #{head_forward.1} parent=5 // pred_check
      _
    $region30: #{head_forward.1} parent=5 // pred_check_branch
      %142 = sbr.rel (%p139) target = $region32
    $region31: #{head_forward.1} parent=5 // pred_region
      %s143 = ssub.s32 %s9, 1
      %s144 = smul.u32 8, %s14
      %p145 = scmp.lt.s32.totalorder %s144, 15
      %s146 = scalar_select %p145, %s144, 15
      %s147 = smul.addr %s146, 8
      %s148 = scalar_lea.vmem %s0, %s147
      %p149 = pneg %p35
      %p150 = pneg %p32
      %p151 = pneg %p56
      %p152 = pneg %p53
      %p153 = pneg %p77
      %p154 = pneg %p74
      %p155 = pneg %p103
      %p156 = pneg %p100
      %s157 = smul.u32 8, %s14
      %p158 = scmp.lt.s32.totalorder %s157, 15
      %s159 = scalar_select %p158, %s157, 15
      %s160 = smul.addr %s159, 4
      %s161 = scalar_lea.vmem %s3, %s160
      %s162 = smul.u32 8, %s14
      %p163 = scmp.lt.s32.totalorder %s162, 15
      %s164 = scalar_select %p163, %s162, 15
      %s165 = smul.addr %s164, 8
      %s166 = scalar_lea.vmem %s0, %s165
      %s167 = smul.u32 8, %s14
      %s168 = smul.u32 8, %s14
      %p169 = scmp.lt.s32.totalorder %s168, 15
      %s170 = scalar_select %p169, %s168, 15
      %s171 = smul.addr %s170, 4
      %s172 = scalar_lea.vmem %s3, %s171
      %s173 = smul.u32 8, %s14
      %v175 = vld [vmem:[%s166] sm:$0xff]
      %v176 = vld [vmem:[%s166 + $0x8] sm:$0xff]
      %v177 = vld [vmem:[%s166 + $0x10] sm:$0xff]
      %v178 = vld [vmem:[%s166 + $0x18] sm:$0xff]
      %v179 = vld [vmem:[%s166 + $0x20] sm:$0xff]
      %v180 = vld [vmem:[%s166 + $0x28] sm:$0xff]
      %v181 = vld [vmem:[%s166 + $0x30] sm:$0xff]
      %v182 = vld [vmem:[%s166 + $0x38] sm:$0xff]
      %vm183 = vcmask 261120
      %v184 = vsel %vm183, %v175, 0.0
      %185 = vadd.xlane.f32.xlu0 %v184
      %v186 = vpop.xlane.xlu0 %185
      %v187 = vsel %vm183, %v176, 0.0
      %188 = vadd.xlane.f32.xlu0 %v187
      %v189 = vpop.xlane.xlu0 %188
      %v190 = vsel %vm183, %v177, 0.0
      %191 = vadd.xlane.f32.xlu0 %v190
      %v192 = vpop.xlane.xlu0 %191
      %v193 = vsel %vm183, %v178, 0.0
      %194 = vadd.xlane.f32.xlu0 %v193
      %v195 = vpop.xlane.xlu0 %194
      %v196 = vsel %vm183, %v179, 0.0
      %197 = vadd.xlane.f32.xlu0 %v196
      %v198 = vpop.xlane.xlu0 %197
      %v199 = vsel %vm183, %v180, 0.0
      %200 = vadd.xlane.f32.xlu0 %v199
      %v201 = vpop.xlane.xlu0 %200
      %v202 = vsel %vm183, %v181, 0.0
      %203 = vadd.xlane.f32.xlu0 %v202
      %v204 = vpop.xlane.xlu0 %203
      %v205 = vsel %vm183, %v182, 0.0
      %206 = vadd.xlane.f32.xlu0 %v205
      %v207 = vpop.xlane.xlu0 %206
      %v208 = vrcp.pop 32.0
      %v209 = vmul.f32 32.0, %v208
      %v210 = vsub.f32 1.0, %v209
      %v211 = vmul.f32 %v208, %v210
      %v212 = vadd.f32 %v208, %v211
      %vm213 = vweird.f32 %v208
      %v214 = vsel %vm213, %v208, %v212
      %v215 = vmul.f32 %v186, %v214
      %v216 = vmul.f32 %v189, %v214
      %v217 = vmul.f32 %v192, %v214
      %v218 = vmul.f32 %v195, %v214
      %v219 = vmul.f32 %v198, %v214
      %v220 = vmul.f32 %v201, %v214
      %v221 = vmul.f32 %v204, %v214
      %v222 = vmul.f32 %v207, %v214
      %v223 = vsub.f32 %v175, %v215
      %v224 = vsub.f32 %v176, %v216
      %v225 = vsub.f32 %v177, %v217
      %v226 = vsub.f32 %v178, %v218
      %v227 = vsub.f32 %v179, %v219
      %v228 = vsub.f32 %v180, %v220
      %v229 = vsub.f32 %v181, %v221
      %v230 = vsub.f32 %v182, %v222
      %v231 = vmul.f32 %v223, %v223
      %v232 = vmul.f32 %v224, %v224
      %v233 = vmul.f32 %v225, %v225
      %v234 = vmul.f32 %v226, %v226
      %v235 = vmul.f32 %v227, %v227
      %v236 = vmul.f32 %v228, %v228
      %v237 = vmul.f32 %v229, %v229
      %v238 = vmul.f32 %v230, %v230
      %v239 = vsel %vm183, %v231, 0.0
      %240 = vadd.xlane.f32.xlu0 %v239
      %v241 = vpop.xlane.xlu0 %240
      %v242 = vsel %vm183, %v232, 0.0
      %243 = vadd.xlane.f32.xlu0 %v242
      %v244 = vpop.xlane.xlu0 %243
      %v245 = vsel %vm183, %v233, 0.0
      %246 = vadd.xlane.f32.xlu0 %v245
      %v247 = vpop.xlane.xlu0 %246
      %v248 = vsel %vm183, %v234, 0.0
      %249 = vadd.xlane.f32.xlu0 %v248
      %v250 = vpop.xlane.xlu0 %249
      %v251 = vsel %vm183, %v235, 0.0
      %252 = vadd.xlane.f32.xlu0 %v251
      %v253 = vpop.xlane.xlu0 %252
      %v254 = vsel %vm183, %v236, 0.0
      %255 = vadd.xlane.f32.xlu0 %v254
      %v256 = vpop.xlane.xlu0 %255
      %v257 = vsel %vm183, %v237, 0.0
      %258 = vadd.xlane.f32.xlu0 %v257
      %v259 = vpop.xlane.xlu0 %258
      %v260 = vsel %vm183, %v238, 0.0
      %261 = vadd.xlane.f32.xlu0 %v260
      %v262 = vpop.xlane.xlu0 %261
      %v263 = vmul.f32 %v241, %v214
      %v264 = vmul.f32 %v244, %v214
      %v265 = vmul.f32 %v247, %v214
      %v266 = vmul.f32 %v250, %v214
      %v267 = vmul.f32 %v253, %v214
      %v268 = vmul.f32 %v256, %v214
      %v269 = vmul.f32 %v259, %v214
      %v270 = vmul.f32 %v262, %v214
      %v271 = vadd.f32 %v263, 1e-05
      %v272 = vadd.f32 %v264, 1e-05
      %v273 = vadd.f32 %v265, 1e-05
      %v274 = vadd.f32 %v266, 1e-05
      %v275 = vadd.f32 %v267, 1e-05
      %v276 = vadd.f32 %v268, 1e-05
      %v277 = vadd.f32 %v269, 1e-05
      %v278 = vadd.f32 %v270, 1e-05
      %v279 = vrsqrt.pop %v271
      %v280 = vmul.f32 %v279, %v271
      %v281 = vmul.f32 %v280, %v279
      %v282 = vmul.f32 0.5, %v281
      %v283 = vsub.f32 1.5, %v282
      %v284 = vmul.f32 %v279, %v283
      %vm285 = vweird.f32 %v271
      %vm286 = vweird.f32 %v279
      %vm287 = vmor %vm285, %vm286
      %v288 = vsel %vm287, %v279, %v284
      %v289 = vrsqrt.pop %v272
      %v290 = vmul.f32 %v289, %v272
      %v291 = vmul.f32 %v290, %v289
      %v292 = vmul.f32 0.5, %v291
      %v293 = vsub.f32 1.5, %v292
      %v294 = vmul.f32 %v289, %v293
      %vm295 = vweird.f32 %v272
      %vm296 = vweird.f32 %v289
      %vm297 = vmor %vm295, %vm296
      %v298 = vsel %vm297, %v289, %v294
      %v299 = vrsqrt.pop %v273
      %v300 = vmul.f32 %v299, %v273
      %v301 = vmul.f32 %v300, %v299
      %v302 = vmul.f32 0.5, %v301
      %v303 = vsub.f32 1.5, %v302
      %v304 = vmul.f32 %v299, %v303
      %vm305 = vweird.f32 %v273
      %vm306 = vweird.f32 %v299
      %vm307 = vmor %vm305, %vm306
      %v308 = vsel %vm307, %v299, %v304
      %v309 = vrsqrt.pop %v274
      %v310 = vmul.f32 %v309, %v274
      %v311 = vmul.f32 %v310, %v309
      %v312 = vmul.f32 0.5, %v311
      %v313 = vsub.f32 1.5, %v312
      %v314 = vmul.f32 %v309, %v313
      %vm315 = vweird.f32 %v274
      %vm316 = vweird.f32 %v309
      %vm317 = vmor %vm315, %vm316
      %v318 = vsel %vm317, %v309, %v314
      %v319 = vrsqrt.pop %v275
      %v320 = vmul.f32 %v319, %v275
      %v321 = vmul.f32 %v320, %v319
      %v322 = vmul.f32 0.5, %v321
      %v323 = vsub.f32 1.5, %v322
      %v324 = vmul.f32 %v319, %v323
      %vm325 = vweird.f32 %v275
      %vm326 = vweird.f32 %v319
      %vm327 = vmor %vm325, %vm326
      %v328 = vsel %vm327, %v319, %v324
      %v329 = vrsqrt.pop %v276
      %v330 = vmul.f32 %v329, %v276
      %v331 = vmul.f32 %v330, %v329
      %v332 = vmul.f32 0.5, %v331
      %v333 = vsub.f32 1.5, %v332
      %v334 = vmul.f32 %v329, %v333
      %vm335 = vweird.f32 %v276
      %vm336 = vweird.f32 %v329
      %vm337 = vmor %vm335, %vm336
      %v338 = vsel %vm337, %v329, %v334
      %v339 = vrsqrt.pop %v277
      %v340 = vmul.f32 %v339, %v277
      %v341 = vmul.f32 %v340, %v339
      %v342 = vmul.f32 0.5, %v341
      %v343 = vsub.f32 1.5, %v342
      %v344 = vmul.f32 %v339, %v343
      %vm345 = vweird.f32 %v277
      %vm346 = vweird.f32 %v339
      %vm347 = vmor %vm345, %vm346
      %v348 = vsel %vm347, %v339, %v344
      %v349 = vrsqrt.pop %v278
      %v350 = vmul.f32 %v349, %v278
      %v351 = vmul.f32 %v350, %v349
      %v352 = vmul.f32 0.5, %v351
      %v353 = vsub.f32 1.5, %v352
      %v354 = vmul.f32 %v349, %v353
      %vm355 = vweird.f32 %v278
      %vm356 = vweird.f32 %v349
      %vm357 = vmor %vm355, %vm356
      %v358 = vsel %vm357, %v349, %v354
      %v359 = vmul.f32 %v223, %v288
      %v360 = vmul.f32 %v224, %v298
      %v361 = vmul.f32 %v225, %v308
      %v362 = vmul.f32 %v226, %v318
      %v363 = vmul.f32 %v227, %v328
      %v364 = vmul.f32 %v228, %v338
      %v365 = vmul.f32 %v229, %v348
      %v366 = vmul.f32 %v230, %v358
      %v367 = vpack.c.bf16 %v360, %v359
      %v368 = vpack.c.bf16 %v362, %v361
      %v369 = vpack.c.bf16 %v364, %v363
      %v370 = vpack.c.bf16 %v366, %v365
      %v371 = vld [vmem:[%s1] sm:$0xf]
      %v372 = vld [vmem:[%s1 + $0x4] sm:$0xf]
      %v373 = vld [vmem:[%s1 + $0x8] sm:$0xf]
      %v374 = vld [vmem:[%s1 + $0xc] sm:$0xf]
      %v375 = vld [vmem:[%s2] sm:$0x1]
      %v377 = vperm.slane %v375, 0
      %v383 = vunpack.c.l.b16 %v371
      %v384 = vunpack.c.l.b16 %v372
      %v385 = vunpack.c.l.b16 %v373
      %v386 = vunpack.c.l.b16 %v374
      %v387 = vpack.c.b16 %v384, %v383
      %v388 = vpack.c.b16 %v386, %v385
      %v392 = vsel %vm183, %v367, 0
      %v395 = vsel %vm183, %v368, 0
      %v398 = vsel %vm183, %v369, 0
      %v401 = vsel %vm183, %v370, 0
      %403 = vmatpush.bf16.msra.mxu0 0
      %404 = vmatpush.bf16.msra.mxu0 0
      %405 = vmatpush.bf16.msra.mxu0 0
      %406 = vmatpush.bf16.msra.mxu0 0
      %407 = vmatpush.bf16.msra.mxu0 0
      %408 = vmatpush.bf16.msra.mxu0 0
      %409 = vmatpush.bf16.msra.mxu0 %v388
      %410 = vmatpush.bf16.msra.mxu0 %v387
      %411 = vmatmul.bf16.gmra.mxu0 %v392
      %v412 = vpop.f32.mrf.mxu0
      %v413 = vadd.f32 %v377, %v412
      %v414 = vpop.f32.mrf.mxu0
      %v415 = vadd.f32 %v377, %v414
      %416 = vmatmul.bf16.gmra.mxu0 %v395
      %v417 = vpop.f32.mrf.mxu0
      %v418 = vadd.f32 %v377, %v417
      %v419 = vpop.f32.mrf.mxu0
      %v420 = vadd.f32 %v377, %v419
      %421 = vmatmul.bf16.gmra.mxu0 %v398
      %v422 = vpop.f32.mrf.mxu0
      %v423 = vadd.f32 %v377, %v422
      %v424 = vpop.f32.mrf.mxu0
      %v425 = vadd.f32 %v377, %v424
      %426 = vmatmul.bf16.gmra.mxu0 %v401
      %v427 = vpop.f32.mrf.mxu0
      %v428 = vadd.f32 %v377, %v427
      %v429 = vpop.f32.mrf.mxu0
      %v430 = vadd.f32 %v377, %v429
      %431 = vdwg.mxu0
      %v432 = vxor.u32 %v413, 2147483648
      %v433 = vxor.u32 %v415, 2147483648
      %v434 = vxor.u32 %v418, 2147483648
      %v435 = vxor.u32 %v420, 2147483648
      %v436 = vxor.u32 %v423, 2147483648
      %v437 = vxor.u32 %v425, 2147483648
      %v438 = vxor.u32 %v428, 2147483648
      %v439 = vxor.u32 %v430, 2147483648
      %v440 = vmul.f32 %v432, 1.442695
      %v441 = vpow.pop %v440
      %v442 = vmul.f32 %v433, 1.442695
      %v443 = vpow.pop %v442
      %v444 = vmul.f32 %v434, 1.442695
      %v445 = vpow.pop %v444
      %v446 = vmul.f32 %v435, 1.442695
      %v447 = vpow.pop %v446
      %v448 = vmul.f32 %v436, 1.442695
      %v449 = vpow.pop %v448
      %v450 = vmul.f32 %v437, 1.442695
      %v451 = vpow.pop %v450
      %v452 = vmul.f32 %v438, 1.442695
      %v453 = vpow.pop %v452
      %v454 = vmul.f32 %v439, 1.442695
      %v455 = vpow.pop %v454
      %v456 = vadd.f32 %v441, 1.0
      %v457 = vadd.f32 %v443, 1.0
      %v458 = vadd.f32 %v445, 1.0
      %v459 = vadd.f32 %v447, 1.0
      %v460 = vadd.f32 %v449, 1.0
      %v461 = vadd.f32 %v451, 1.0
      %v462 = vadd.f32 %v453, 1.0
      %v463 = vadd.f32 %v455, 1.0
      %v464 = vrcp.pop %v456
      %v465 = vmul.f32 %v456, %v464
      %v466 = vsub.f32 1.0, %v465
      %v467 = vmul.f32 %v464, %v466
      %v468 = vadd.f32 %v464, %v467
      %vm469 = vweird.f32 %v456
      %vm470 = vweird.f32 %v464
      %vm471 = vmor %vm469, %vm470
      %v472 = vsel %vm471, %v464, %v468
      %v473 = vand.u32 2147483647, %v456
      %vm474 = vcmp.eq.f32.partialorder %v473, 8.507059e+37
      %v475 = vand.u32 %v456, 2147483648
      %v476 = vor.u32 1.1754944e-38, %v475
      %v477 = vsel %vm474, %v476, %v472
      %v478 = vmul.f32 1.0, %v477
      %v479 = vrcp.pop %v457
      %v480 = vmul.f32 %v457, %v479
      %v481 = vsub.f32 1.0, %v480
      %v482 = vmul.f32 %v479, %v481
      %v483 = vadd.f32 %v479, %v482
      %vm484 = vweird.f32 %v457
      %vm485 = vweird.f32 %v479
      %vm486 = vmor %vm484, %vm485
      %v487 = vsel %vm486, %v479, %v483
      %v488 = vand.u32 2147483647, %v457
      %vm489 = vcmp.eq.f32.partialorder %v488, 8.507059e+37
      %v490 = vand.u32 %v457, 2147483648
      %v491 = vor.u32 1.1754944e-38, %v490
      %v492 = vsel %vm489, %v491, %v487
      %v493 = vmul.f32 1.0, %v492
      %v494 = vrcp.pop %v458
      %v495 = vmul.f32 %v458, %v494
      %v496 = vsub.f32 1.0, %v495
      %v497 = vmul.f32 %v494, %v496
      %v498 = vadd.f32 %v494, %v497
      %vm499 = vweird.f32 %v458
      %vm500 = vweird.f32 %v494
      %vm501 = vmor %vm499, %vm500
      %v502 = vsel %vm501, %v494, %v498
      %v503 = vand.u32 2147483647, %v458
      %vm504 = vcmp.eq.f32.partialorder %v503, 8.507059e+37
      %v505 = vand.u32 %v458, 2147483648
      %v506 = vor.u32 1.1754944e-38, %v505
      %v507 = vsel %vm504, %v506, %v502
      %v508 = vmul.f32 1.0, %v507
      %v509 = vrcp.pop %v459
      %v510 = vmul.f32 %v459, %v509
      %v511 = vsub.f32 1.0, %v510
      %v512 = vmul.f32 %v509, %v511
      %v513 = vadd.f32 %v509, %v512
      %vm514 = vweird.f32 %v459
      %vm515 = vweird.f32 %v509
      %vm516 = vmor %vm514, %vm515
      %v517 = vsel %vm516, %v509, %v513
      %v518 = vand.u32 2147483647, %v459
      %vm519 = vcmp.eq.f32.partialorder %v518, 8.507059e+37
      %v520 = vand.u32 %v459, 2147483648
      %v521 = vor.u32 1.1754944e-38, %v520
      %v522 = vsel %vm519, %v521, %v517
      %v523 = vmul.f32 1.0, %v522
      %v524 = vrcp.pop %v460
      %v525 = vmul.f32 %v460, %v524
      %v526 = vsub.f32 1.0, %v525
      %v527 = vmul.f32 %v524, %v526
      %v528 = vadd.f32 %v524, %v527
      %vm529 = vweird.f32 %v460
      %vm530 = vweird.f32 %v524
      %vm531 = vmor %vm529, %vm530
      %v532 = vsel %vm531, %v524, %v528
      %v533 = vand.u32 2147483647, %v460
      %vm534 = vcmp.eq.f32.partialorder %v533, 8.507059e+37
      %v535 = vand.u32 %v460, 2147483648
      %v536 = vor.u32 1.1754944e-38, %v535
      %v537 = vsel %vm534, %v536, %v532
      %v538 = vmul.f32 1.0, %v537
      %v539 = vrcp.pop %v461
      %v540 = vmul.f32 %v461, %v539
      %v541 = vsub.f32 1.0, %v540
      %v542 = vmul.f32 %v539, %v541
      %v543 = vadd.f32 %v539, %v542
      %vm544 = vweird.f32 %v461
      %vm545 = vweird.f32 %v539
      %vm546 = vmor %vm544, %vm545
      %v547 = vsel %vm546, %v539, %v543
      %v548 = vand.u32 2147483647, %v461
      %vm549 = vcmp.eq.f32.partialorder %v548, 8.507059e+37
      %v550 = vand.u32 %v461, 2147483648
      %v551 = vor.u32 1.1754944e-38, %v550
      %v552 = vsel %vm549, %v551, %v547
      %v553 = vmul.f32 1.0, %v552
      %v554 = vrcp.pop %v462
      %v555 = vmul.f32 %v462, %v554
      %v556 = vsub.f32 1.0, %v555
      %v557 = vmul.f32 %v554, %v556
      %v558 = vadd.f32 %v554, %v557
      %vm559 = vweird.f32 %v462
      %vm560 = vweird.f32 %v554
      %vm561 = vmor %vm559, %vm560
      %v562 = vsel %vm561, %v554, %v558
      %v563 = vand.u32 2147483647, %v462
      %vm564 = vcmp.eq.f32.partialorder %v563, 8.507059e+37
      %v565 = vand.u32 %v462, 2147483648
      %v566 = vor.u32 1.1754944e-38, %v565
      %v567 = vsel %vm564, %v566, %v562
      %v568 = vmul.f32 1.0, %v567
      %v569 = vrcp.pop %v463
      %v570 = vmul.f32 %v463, %v569
      %v571 = vsub.f32 1.0, %v570
      %v572 = vmul.f32 %v569, %v571
      %v573 = vadd.f32 %v569, %v572
      %vm574 = vweird.f32 %v463
      %vm575 = vweird.f32 %v569
      %vm576 = vmor %vm574, %vm575
      %v577 = vsel %vm576, %v569, %v573
      %v578 = vand.u32 2147483647, %v463
      %vm579 = vcmp.eq.f32.partialorder %v578, 8.507059e+37
      %v580 = vand.u32 %v463, 2147483648
      %v581 = vor.u32 1.1754944e-38, %v580
      %v582 = vsel %vm579, %v581, %v577
      %v583 = vmul.f32 1.0, %v582
      %v584 = vpack.c.bf16 %v478, %v478
      %v585 = vpack.c.bf16 %v493, %v493
      %v586 = vpack.c.bf16 %v508, %v508
      %v587 = vpack.c.bf16 %v523, %v523
      %v588 = vpack.c.bf16 %v538, %v538
      %v589 = vpack.c.bf16 %v553, %v553
      %v590 = vpack.c.bf16 %v568, %v568
      %v591 = vpack.c.bf16 %v583, %v583
      %592 = vst [vmem:[%s172] sm:$0xf] %v584
      %593 = vst [vmem:[%s172 + $0x4] sm:$0xf] %v585
      %594 = vst [vmem:[%s172 + $0x8] sm:$0xf] %v586
      %595 = vst [vmem:[%s172 + $0xc] sm:$0xf] %v587
      %596 = vst [vmem:[%s172 + $0x10] sm:$0xf] %v588
      %597 = vst [vmem:[%s172 + $0x14] sm:$0xf] %v589
      %598 = vst [vmem:[%s172 + $0x18] sm:$0xf] %v590
      %599 = vst [vmem:[%s172 + $0x1c] sm:$0xf] %v591
      %s600 = smul.u32 8, %s14
      %p601 = scmp.lt.s32.totalorder %s600, 15
      %s602 = scalar_select %p601, %s600, 15
      %s603 = smul.addr %s602, 4
      %s604 = scalar_lea.vmem %s3, %s603
      // Predicated region
      $region33: #{head_forward.1} parent=31 // pred_check
        %p605 = pneg %p100
      $region34: #{head_forward.1} parent=31 // pred_check_branch
        %607 = sbr.rel (%p605) target = $region36
      $region35: #{head_forward.1} parent=31 // pred_region
        %s608 = smul.u32 8, %s14
      $region36: #{head_forward.1} parent=31 // pred_fallthru
        _
    $region32: #{head_forward.1} parent=5 // pred_fallthru
      _
    %p609 = scmp.le.s32.totalorder 2, %s9
    // Predicated region
    $region37: #{head_forward.1} parent=5 // pred_check
      %p610 = pneg %p609
    $region38: #{head_forward.1} parent=5 // pred_check_branch
      %612 = sbr.rel (%p610) target = $region40
    $region39: #{head_forward.1} parent=5 // pred_region
      %s613 = ssub.s32 %s9, 2
      // Predicated region
      $region41: #{head_forward.1} parent=39 // pred_check
        %p614 = pneg %p106
      $region42: #{head_forward.1} parent=39 // pred_check_branch
        %616 = sbr.rel (%p614) target = $region44
      $region43: #{head_forward.1} parent=39 // pred_region
        %s617 = smul.u32 8, %s15
        %p618 = scmp.lt.s32.totalorder %s617, 15
        %s619 = scalar_select %p618, %s617, 15
        %s620 = smul.addr %s619, 4
        %s621 = scalar_lea.vmem %s3, %s620
      $region44: #{head_forward.1} parent=39 // pred_fallthru
        _
    $region40: #{head_forward.1} parent=5 // pred_fallthru
      _
  $region6: #{head_forward.1} parent=0 // loop_footer
    %s13 = sadd.s32 1, %s9
  $region7: #{head_forward.1} parent=0 // loop_footer_branch
    %8 = sbr.rel target = $region3
  $region8: #{head_forward.1} parent=0 // loop_exit
    _

</llo_original>
